<compile_context>
chip_gen: v6e
topology: v6e:2x2x1
jax: 0.10.0
libtpu: 0.0.40
codegen_flags: <defaults>
</compile_context>

<pallas_src>
import functools

import jax
import jax.numpy as jnp
from jax.experimental import pallas as pl
from jax.experimental.pallas import tpu as pltpu


# ---- params layout (f32 vector, prefetched into SMEM) -------------------------------
_CX, _CY, _HT, _IWX, _IWY, _CT, _ST = 0, 1, 2, 3, 4, 5, 6          # streamed path
_A0, _A1, _A2, _B0, _B1, _B2 = 7, 8, 9, 10, 11, 12                  # folded synth path
_X0, _Y0, _DX, _DY = 13, 14, 15, 16                                 # synth coords
_NPARAMS = 17


def _fast_recip(d):
    """1/d on the EUP (approx) + one Newton-Raphson step (~1e-6 relative)."""
    r = pl.reciprocal(d, approx=True)
    return r * (2.0 - d * r)


# ---- kernels -------------------------------------------------------------------------
def _gauss_kernel_stream(params_ref, x_ref, y_ref, o_ref, *, f_type: int):
    x = x_ref[...]
    y = y_ref[...]
    cx = params_ref[_CX]
    cy = params_ref[_CY]
    h = params_ref[_HT]
    if f_type in (1, 4):
        ct = params_ref[_CT]
        st = params_ref[_ST]
        iwx = params_ref[_IWX]   # -0.5 / |width_x|
        iwy = params_ref[_IWY]   # -0.5 / |width_y|
        ddx = x - cx
        ddy = y - cy
        a = ct * ddx + st * ddy
        b = st * ddx - ct * ddy
        o_ref[...] = h * jnp.exp(a * a * iwx + b * b * iwy)
    elif f_type == 2:
        d = 0.1 + (cx - x) ** 2 + (cy - y) ** 2
        o_ref[...] = h * _fast_recip(d)
    elif f_type == 3:
        d = 0.1 + jnp.abs(cx - x) + jnp.abs(cy - y)
        o_ref[...] = h * _fast_recip(d)
    else:
        raise ValueError("Unsupported function type")


def _gauss_kernel_synth(params_ref, o_ref, *, f_type: int, block_rows: int):
    """Coordinates synthesized in-kernel: x[i,j] = x0 + dx*j, y[i,j] = y0 + dy*i."""
    th, w = o_ref.shape
    # Scalar row offset of this tile (scalar ALU; fp32 exact for any practical H).
    row0 = (pl.program_id(0) * block_rows).astype(jnp.float32)
    cols = jax.lax.broadcasted_iota(jnp.float32, (th, w), 1)
    rows = jax.lax.broadcasted_iota(jnp.float32, (th, w), 0)
    h = params_ref[_HT]

    if f_type in (1, 4):
        # Folded affine forms: a' = A0 + A1*j + A2*i ; b' = B0 + B1*j + B2*i
        # with the per-tile row offset folded into the constants on the scalar unit.
        a0 = params_ref[_A0] + params_ref[_A2] * row0
        b0 = params_ref[_B0] + params_ref[_B2] * row0
        a = a0 + params_ref[_A1] * cols + params_ref[_A2] * rows
        b = b0 + params_ref[_B1] * cols + params_ref[_B2] * rows
        o_ref[...] = h * jnp.exp(-(a * a + b * b))
    elif f_type in (2, 3):
        cx = params_ref[_CX]
        cy = params_ref[_CY]
        dx = params_ref[_DX]
        dy = params_ref[_DY]
        x = params_ref[_X0] + dx * cols
        y = (params_ref[_Y0] + dy * row0) + dy * rows
        if f_type == 2:
            d = 0.1 + (cx - x) ** 2 + (cy - y) ** 2
        else:
            d = 0.1 + jnp.abs(cx - x) + jnp.abs(cy - y)
        o_ref[...] = h * _fast_recip(d)
    else:
        raise ValueError("Unsupported function type")


# ---- wrapper-side parameter folding --------------------------------------------------
def _build_params(weights, x0=0.0, y0=0.0, dx=1.0, dy=1.0):
    w = jnp.asarray(weights, dtype=jnp.float32)
    cx, cy, h, wx, wy, ang = w[0], w[1], w[2], w[3], w[4], w[5]
    ct = jnp.cos(ang)
    st = jnp.sin(ang)
    iwx = jnp.float32(-0.5) / jnp.abs(wx)
    iwy = jnp.float32(-0.5) / jnp.abs(wy)
    # sqrt(0.5/|w|) scale factors for the folded synth path.
    sa = jnp.sqrt(jnp.float32(0.5) / jnp.abs(wx))
    sb = jnp.sqrt(jnp.float32(0.5) / jnp.abs(wy))
    x0f, y0f = jnp.float32(x0), jnp.float32(y0)
    dxf, dyf = jnp.float32(dx), jnp.float32(dy)
    a0 = sa * (ct * (x0f - cx) + st * (y0f - cy))
    a1 = sa * ct * dxf
    a2 = sa * st * dyf
    b0 = sb * (st * (x0f - cx) - ct * (y0f - cy))
    b1 = sb * st * dxf
    b2 = -sb * ct * dyf
    params = jnp.stack(
        [cx, cy, h, iwx, iwy, ct, st, a0, a1, a2, b0, b1, b2, x0f, y0f, dxf, dyf]
    ).astype(jnp.float32)
    assert params.shape == (_NPARAMS,)
    return params


# ---- generation-aware tiling ---------------------------------------------------------
def _vmem_capacity_bytes():
    try:
        return int(pltpu.get_tpu_info().vmem_capacity_bytes)
    except Exception:
        return 64 << 20  # conservative default (v7x per-TC)


def _tile_targets():
    """Returns (vmem_limit_bytes, streamed_tile_target, synth_tile_target)."""
    cap = _vmem_capacity_bytes()
    if cap >= (100 << 20):          # v5e / v6e: 128 MiB physical VMEM
        return 64 << 20, 8 << 20, 16 << 20
    else:                            # v7x: 64 MiB per TensorCore
        return 32 << 20, 4 << 20, 8 << 20


def _choose_block_rows(H, W, tile_target_bytes):
    per_row = max(W * 4, 1)
    th = max(8, (tile_target_bytes // per_row) // 8 * 8)
    # Guarantee >= 2 grid steps when the plane is tall enough: megacore sharding on
    # v7x and DMA/compute overlap both need multiple tiles.
    if H >= 16:
        half = ((pl.cdiv(H, 2) + 7) // 8) * 8
        th = min(th, half)
    th = min(th, ((H + 7) // 8) * 8)
    return max(th, 8)


def _compiler_params(vmem_limit):
    return pltpu.CompilerParams(
        dimension_semantics=("parallel",),  # independent row tiles -> both TCs on v7x
        vmem_limit_bytes=vmem_limit,
    )


# ---- public entry points ---------------------------------------------------------------
def model_forward(weights, X, f_type: int, *, block_rows: int | None = None):
    """Equivalent of Model(weights).forward(X, f_type) with X = (x_plane, y_plane)."""
    x, y = X
    x = jnp.asarray(x, jnp.float32)
    y = jnp.asarray(y, jnp.float32)
    assert x.shape == y.shape and x.ndim == 2
    H, W = x.shape
    n = H * W

    # Lane-dense re-layout: if W is not a multiple of 128, fold the contiguous
    # row-major plane into a lane-dense 2D slab (free reshape; result is raveled anyway).
    Hk, Wk = H, W
    if W % 128 != 0:
        for wp in (1024, 512, 256, 128):
            if n % wp == 0:
                Hk, Wk = n // wp, wp
                x = x.reshape(Hk, Wk)
                y = y.reshape(Hk, Wk)
                break
        # else: fall back to the original layout (masked stores on the last dim).

    vmem_limit, stream_target, _ = _tile_targets()
    th = block_rows if block_rows is not None else _choose_block_rows(Hk, Wk, stream_target)
    grid = (pl.cdiv(Hk, th),)   # ragged last tile handled by Pallas (no jnp.pad)

    params = _build_params(weights)
    kernel = functools.partial(_gauss_kernel_stream, f_type=f_type)

    out2d = pl.pallas_call(
        kernel,
        out_shape=jax.ShapeDtypeStruct((Hk, Wk), jnp.float32),
        grid_spec=pltpu.PrefetchScalarGridSpec(
            num_scalar_prefetch=1,
            grid=grid,
            in_specs=[
                pl.BlockSpec((th, Wk), lambda i, p: (i, 0)),
                pl.BlockSpec((th, Wk), lambda i, p: (i, 0)),
            ],
            out_specs=pl.BlockSpec((th, Wk), lambda i, p: (i, 0)),
        ),
        compiler_params=_compiler_params(vmem_limit),
    )(params, x, y)

    # torch.ravel equivalent: free reshape (no padding to strip).
    return out2d.reshape(n)


def model_forward_meshgrid(
    weights, shape, f_type: int, *, x0=0.0, y0=0.0, dx=1.0, dy=1.0,
    block_rows: int | None = None,
):
    """Fast path for X being a regular row-major meshgrid:
    x[i, j] = x0 + dx * j,  y[i, j] = y0 + dy * i.
    Coordinates synthesized in-kernel (4 B/elem HBM traffic instead of 12)."""
    H, W = shape
    vmem_limit, _, synth_target = _tile_targets()
    th = block_rows if block_rows is not None else _choose_block_rows(H, W, synth_target)
    grid = (pl.cdiv(H, th),)

    params = _build_params(weights, x0=x0, y0=y0, dx=dx, dy=dy)
    kernel = functools.partial(_gauss_kernel_synth, f_type=f_type, block_rows=th)

    out2d = pl.pallas_call(
        kernel,
        out_shape=jax.ShapeDtypeStruct((H, W), jnp.float32),
        grid_spec=pltpu.PrefetchScalarGridSpec(
            num_scalar_prefetch=1,
            grid=grid,
            in_specs=[],
            out_specs=pl.BlockSpec((th, W), lambda i, p: (i, 0)),
        ),
        compiler_params=_compiler_params(vmem_limit),
    )(params)

    return out2d.reshape(-1)


# ---- pure-JAX reference (mirrors the torch module) -----------------------------------
def _reference(weights, xs, ys, f_type):
    cx, cy, h, wx, wy, ang = [weights[i] for i in range(6)]
    if f_type in (1, 4):
        ct, st = jnp.cos(ang), jnp.sin(ang)
        out = h * jnp.exp(
            -0.5
            * (
                (ct * (xs - cx) + st * (ys - cy)) ** 2 / jnp.abs(wx)
                + (st * (xs - cx) - ct * (ys - cy)) ** 2 / jnp.abs(wy)
            )
        )
    elif f_type == 2:
        out = h / (0.1 + (cx - xs) ** 2 + (cy - ys) ** 2)
    elif f_type == 3:
        out = h / (0.1 + jnp.abs(cx - xs) + jnp.abs(cy - ys))
    else:
        raise ValueError("Unsupported function type")
    return out.reshape(-1)


if __name__ == "__main__":
    key = jax.random.PRNGKey(0)
    # (center_x, center_y, height, width_x, width_y, angle) + tiny perturbation.
    weights = jnp.array([60.0, 30.5, 1.5, 40.0, 6.0, 0.7], dtype=jnp.float32)
    weights = weights + 0.01 * jax.random.normal(key, (6,), dtype=jnp.float32)

    # --- streamed path, lane-dense width, ragged row tiling (H % th != 0) ---
    H, W = 100, 256
    ys, xs = jnp.meshgrid(
        jnp.arange(H, dtype=jnp.float32), jnp.arange(W, dtype=jnp.float32), indexing="ij"
    )
    for ft in (1, 2, 3, 4):
        out = model_forward(weights, (xs, ys), ft, block_rows=32)
        jax.block_until_ready(out)
        ref = _reference(weights, xs, ys, ft)
        assert out.shape == (H * W,)
        assert jnp.allclose(out, ref, atol=1e-5, rtol=1e-4), f"stream mismatch f_type={ft}"

    # --- streamed path, non-128 width -> wrapper folds into a lane-dense slab ---
    H2, W2 = 64, 200
    ys2, xs2 = jnp.meshgrid(
        jnp.arange(H2, dtype=jnp.float32), jnp.arange(W2, dtype=jnp.float32), indexing="ij"
    )
    for ft in (1, 2, 3, 4):
        out = model_forward(weights, (xs2, ys2), ft)
        jax.block_until_ready(out)
        ref = _reference(weights, xs2, ys2, ft)
        assert out.shape == (H2 * W2,)
        assert jnp.allclose(out, ref, atol=1e-5, rtol=1e-4), f"flat mismatch f_type={ft}"

    # --- meshgrid fast path (coordinates synthesized in-kernel, folded affine math) ---
    H3, W3 = 128, 256
    ys3, xs3 = jnp.meshgrid(
        jnp.arange(H3, dtype=jnp.float32), jnp.arange(W3, dtype=jnp.float32), indexing="ij"
    )
    for ft in (1, 2, 3, 4):
        out = model_forward_meshgrid(
            weights, (H3, W3), ft, x0=0.0, y0=0.0, dx=1.0, dy=1.0, block_rows=32
        )
        jax.block_until_ready(out)
        ref = _reference(weights, xs3, ys3, ft)
        assert out.shape == (H3 * W3,)
        assert jnp.allclose(out, ref, atol=1e-5, rtol=1e-4), f"synth mismatch f_type={ft}"

    print("KERNEL_OK")
</pallas_src>

<mosaic_0001>
module attributes {stable_mosaic.version = 11 : i64} {
  func.func @_gauss_kernel_stream(%arg0: i32, %arg1: memref<17xf32, #tpu.memory_space<smem>>, %arg2: memref<32x256xf32, #tpu.memory_space<vmem>>, %arg3: memref<32x256xf32, #tpu.memory_space<vmem>>, %arg4: memref<32x256xf32, #tpu.memory_space<vmem>>) attributes {dimension_semantics = [#tpu.dimension_semantics<parallel>], iteration_bounds = array<i64: 4>, scalar_prefetch = 1 : i64, scratch_operands = 0 : i64, tpu.core_type = #tpu.core_type<tc>, window_params = [{transform_indices = @transform_0, window_bounds = array<i64: 32, 256>}, {transform_indices = @transform_1, window_bounds = array<i64: 32, 256>}, {transform_indices = @transform_2, window_bounds = array<i64: 32, 256>}]} {
    %c0 = arith.constant 0 : index
    %c0_0 = arith.constant 0 : index
    %0 = vector.load %arg2[%c0, %c0_0] : memref<32x256xf32, #tpu.memory_space<vmem>>, vector<32x256xf32>
    %c0_1 = arith.constant 0 : index
    %c0_2 = arith.constant 0 : index
    %1 = vector.load %arg3[%c0_1, %c0_2] : memref<32x256xf32, #tpu.memory_space<vmem>>, vector<32x256xf32>
    %c0_3 = arith.constant 0 : index
    %2 = memref.load %arg1[%c0_3] : memref<17xf32, #tpu.memory_space<smem>>
    %c1 = arith.constant 1 : index
    %3 = memref.load %arg1[%c1] : memref<17xf32, #tpu.memory_space<smem>>
    %c2 = arith.constant 2 : index
    %4 = memref.load %arg1[%c2] : memref<17xf32, #tpu.memory_space<smem>>
    %c5 = arith.constant 5 : index
    %5 = memref.load %arg1[%c5] : memref<17xf32, #tpu.memory_space<smem>>
    %c6 = arith.constant 6 : index
    %6 = memref.load %arg1[%c6] : memref<17xf32, #tpu.memory_space<smem>>
    %c3 = arith.constant 3 : index
    %7 = memref.load %arg1[%c3] : memref<17xf32, #tpu.memory_space<smem>>
    %c4 = arith.constant 4 : index
    %8 = memref.load %arg1[%c4] : memref<17xf32, #tpu.memory_space<smem>>
    %9 = vector.broadcast %2 : f32 to vector<32x256xf32>
    %10 = arith.subf %0, %9 : vector<32x256xf32>
    %11 = vector.broadcast %3 : f32 to vector<32x256xf32>
    %12 = arith.subf %1, %11 : vector<32x256xf32>
    %13 = vector.broadcast %5 : f32 to vector<32x256xf32>
    %14 = arith.mulf %13, %10 : vector<32x256xf32>
    %15 = vector.broadcast %6 : f32 to vector<32x256xf32>
    %16 = arith.mulf %15, %12 : vector<32x256xf32>
    %17 = arith.addf %14, %16 : vector<32x256xf32>
    %18 = vector.broadcast %6 : f32 to vector<32x256xf32>
    %19 = arith.mulf %18, %10 : vector<32x256xf32>
    %20 = vector.broadcast %5 : f32 to vector<32x256xf32>
    %21 = arith.mulf %20, %12 : vector<32x256xf32>
    %22 = arith.subf %19, %21 : vector<32x256xf32>
    %23 = arith.mulf %17, %17 : vector<32x256xf32>
    %24 = vector.broadcast %7 : f32 to vector<32x256xf32>
    %25 = arith.mulf %23, %24 : vector<32x256xf32>
    %26 = arith.mulf %22, %22 : vector<32x256xf32>
    %27 = vector.broadcast %8 : f32 to vector<32x256xf32>
    %28 = arith.mulf %26, %27 : vector<32x256xf32>
    %29 = arith.addf %25, %28 : vector<32x256xf32>
    %30 = math.exp %29 : vector<32x256xf32>
    %31 = vector.broadcast %4 : f32 to vector<32x256xf32>
    %32 = arith.mulf %31, %30 : vector<32x256xf32>
    %c0_4 = arith.constant 0 : index
    %c0_5 = arith.constant 0 : index
    %33 = vector.load %arg4[%c0_4, %c0_5] : memref<32x256xf32, #tpu.memory_space<vmem>>, vector<32x256xf32>
    tpu.vector_store %arg4[%c0_4, %c0_5], %32 {strides = array<i32>} : memref<32x256xf32, #tpu.memory_space<vmem>>, vector<32x256xf32>,
    return
  }
  func.func @transform_0(%arg0: i32, %arg1: memref<17xf32, #tpu.memory_space<smem>>) -> (i32, i32) {
    %c0_i32 = arith.constant 0 : i32
    %c0_i32_0 = arith.constant 0 : i32
    return %arg0, %c0_i32 : i32, i32
  }
  func.func @transform_1(%arg0: i32, %arg1: memref<17xf32, #tpu.memory_space<smem>>) -> (i32, i32) {
    %c0_i32 = arith.constant 0 : i32
    %c0_i32_0 = arith.constant 0 : i32
    return %arg0, %c0_i32 : i32, i32
  }
  func.func @transform_2(%arg0: i32, %arg1: memref<17xf32, #tpu.memory_space<smem>>) -> (i32, i32) {
    %c0_i32 = arith.constant 0 : i32
    %c0_i32_0 = arith.constant 0 : i32
    return %arg0, %c0_i32 : i32, i32
  }
}

</mosaic_0001>

<llo_original>
// kernel: tpu_custom_call.1
$region0: #{tpu_custom_call.1}
  #allocation0 [shape = 'u32[]', space=smem, size = 0x4, offset = 0x4, fixed_abs, tag = 'smem constant byte address 0x4 - core index']
  #allocation1 [shape = 'u32[144,128]{1,0:T(1,128)}', space=vmem, size = 0x12000, scoped, tag = 'internal scratch']
  #allocation2 [shape = 's32[1]{0}', space=sflag, size = 0x4, scoped, tag = 'scoped memory for tpu_custom_call.1']
  #allocation3 [shape = 'u8[512]{0}', space=smem, size = 0x200, scoped, tag = 'prefetched SMEM operand 0']
  %s0 = inlined_call_operand.hbm [shape: f32[17], index: 0, kind: input, shape index: {}]
  %s1 = inlined_call_operand.hbm [shape: f32[100,256], index: 1, kind: input, shape index: {}]
  %s2 = inlined_call_operand.hbm [shape: f32[100,256], index: 2, kind: input, shape index: {}]
  %s3 = inlined_call_operand.hbm [shape: f32[100,256], index: 3, kind: output, shape index: {}]
  %s4 = sld [smem:[#allocation0]]
  $region49: #{tpu_custom_call.1} parent=0
    _
  %s6 = ssub.s32 1, %s4
  %s7 = scalar_select 0, %s6, %s4
  %9 = dma.hbm_to_smem %s0, 16, [#allocation3], [#allocation2]
  %10 = dma.done [#allocation2], 16
  %11 = sfence
  $region1: #{tpu_custom_call.1} parent=0
    #allocation4 [shape = 'u8[65536]{0}', space=vmem, size = 0x10000, scoped, tag = 'input window, operand 1']
    #allocation5 [shape = 's32[2]{0}', space=sflag, size = 0x8, scoped, tag = 'scoped memory for tpu_custom_call.1']
    #allocation6 [shape = 's32[2]{0}', space=sflag, size = 0x8, scoped, tag = 'scoped memory for tpu_custom_call.1']
    #allocation7 [shape = 'u8[65536]{0}', space=vmem, size = 0x10000, scoped, tag = 'input window, operand 2']
    #allocation8 [shape = 's32[2]{0}', space=sflag, size = 0x8, scoped, tag = 'scoped memory for tpu_custom_call.1']
    #allocation9 [shape = 'u8[65536]{0}', space=vmem, size = 0x10000, scoped, tag = 'output window, operand 0']
    %12 = vsyncpa [#allocation5], 0
    %s13 = scalar_lea.sflag [#allocation5], 1
    %14 = vsyncpa %s13, 0
    %15 = vsyncpa [#allocation8], 0
    %s16 = scalar_lea.sflag [#allocation8], 1
    %17 = vsyncpa %s16, 0
    %18 = vsyncpa [#allocation6], 0
    %s19 = scalar_lea.sflag [#allocation6], 1
    %20 = vsyncpa %s19, 0
    loop: start=0, step=1, limit=6
    $region2: #{tpu_custom_call.1} parent=1 // loop_pre_header
      _
    $region3: #{tpu_custom_call.1} parent=1 // loop_header
      %s22 = sphi 0, %s26
      %p23 = scmp.ge.s32.totalorder %s22, 6
      %s32 = sphi 0, %s34
      %s35 = sphi 0, %s32
      %s36 = sphi 0, %s35
      %s52 = sphi 0, %s36
      %s58 = sphi 0, %s60
      %s61 = sphi 0, %s58
      %s62 = sphi 0, %s61
      %s78 = sphi 0, %s62
      %s84 = sphi 0, %s86
      %s87 = sphi 0, %s84
      %s88 = sphi 0, %s87
      %s104 = sphi 0, %s88
    $region4: #{tpu_custom_call.1} parent=1 // loop_header_branch
      %25 = sbr.rel (%p23) target = $region8
    $region5: #{tpu_custom_call.1} parent=1 // loop_body
      %s27 = ssub.s32 %s22, 1
      %s28 = ssub.s32 %s22, 2
      %s29 = sadd.s32 %s22, 1
      %s30 = ssub.s32 %s22, %s29
      %p31 = scmp.eq.s32.totalorder %s30, 0
      %s33 = sadd.s32 %s32, 1
      %s34 = scalar_select %p31, %s32, %s33
      %p37 = pneg %p31
      %p38 = scmp.eq.s32.totalorder %s22, 3
      %p39 = por %p37, %p38
      %p40 = scmp.ne.s32.totalorder %s32, %s35
      %p41 = scmp.eq.s32.totalorder %s22, 0
      %p42 = por %p40, %p41
      %p43 = scmp.ne.s32.totalorder %s32, %s35
      %p44 = scmp.eq.s32.totalorder %s27, 3
      %p45 = por %p43, %p44
      %p46 = scmp.ne.s32.totalorder %s35, %s36
      %p47 = scmp.eq.s32.totalorder %s27, 0
      %p48 = por %p46, %p47
      %p49 = scmp.ne.s32.totalorder %s35, %s36
      %p50 = scmp.eq.s32.totalorder %s28, 3
      %p51 = por %p49, %p50
      %p53 = scmp.ne.s32.totalorder %s36, %s52
      %p54 = scmp.eq.s32.totalorder %s28, 0
      %p55 = por %p53, %p54
      %s56 = ssub.s32 %s22, %s29
      %p57 = scmp.eq.s32.totalorder %s56, 0
      %s59 = sadd.s32 %s58, 1
      %s60 = scalar_select %p57, %s58, %s59
      %p63 = pneg %p57
      %p64 = scmp.eq.s32.totalorder %s22, 3
      %p65 = por %p63, %p64
      %p66 = scmp.ne.s32.totalorder %s58, %s61
      %p67 = scmp.eq.s32.totalorder %s22, 0
      %p68 = por %p66, %p67
      %p69 = scmp.ne.s32.totalorder %s58, %s61
      %p70 = scmp.eq.s32.totalorder %s27, 3
      %p71 = por %p69, %p70
      %p72 = scmp.ne.s32.totalorder %s61, %s62
      %p73 = scmp.eq.s32.totalorder %s27, 0
      %p74 = por %p72, %p73
      %p75 = scmp.ne.s32.totalorder %s61, %s62
      %p76 = scmp.eq.s32.totalorder %s28, 3
      %p77 = por %p75, %p76
      %p79 = scmp.ne.s32.totalorder %s62, %s78
      %p80 = scmp.eq.s32.totalorder %s28, 0
      %p81 = por %p79, %p80
      %s82 = ssub.s32 %s22, %s29
      %p83 = scmp.eq.s32.totalorder %s82, 0
      %s85 = sadd.s32 %s84, 1
      %s86 = scalar_select %p83, %s84, %s85
      %p89 = pneg %p83
      %p90 = scmp.eq.s32.totalorder %s22, 3
      %p91 = por %p89, %p90
      %p92 = scmp.ne.s32.totalorder %s84, %s87
      %p93 = scmp.eq.s32.totalorder %s22, 0
      %p94 = por %p92, %p93
      %p95 = scmp.ne.s32.totalorder %s84, %s87
      %p96 = scmp.eq.s32.totalorder %s27, 3
      %p97 = por %p95, %p96
      %p98 = scmp.ne.s32.totalorder %s87, %s88
      %p99 = scmp.eq.s32.totalorder %s27, 0
      %p100 = por %p98, %p99
      %p101 = scmp.ne.s32.totalorder %s87, %s88
      %p102 = scmp.eq.s32.totalorder %s28, 3
      %p103 = por %p101, %p102
      %p105 = scmp.ne.s32.totalorder %s88, %s104
      %p106 = scmp.eq.s32.totalorder %s28, 0
      %p107 = por %p105, %p106
      %p108 = scmp.le.s32.totalorder 1, %s22
      %p109 = scmp.lt.s32.totalorder %s22, 5
      %p110 = pnand %p108, %p109
      %p111 = pneg %p110
      // Predicated region
      $region9: #{tpu_custom_call.1} parent=5 // pred_check
        _
      $region10: #{tpu_custom_call.1} parent=5 // pred_check_branch
        %113 = sbr.rel (%p110) target = $region12
      $region11: #{tpu_custom_call.1} parent=5 // pred_region
        %s114 = ssub.s32 %s22, 1
      $region12: #{tpu_custom_call.1} parent=5 // pred_fallthru
        _
      %p115 = scmp.lt.s32.totalorder %s22, 4
      // Predicated region
      $region13: #{tpu_custom_call.1} parent=5 // pred_check
        %p116 = pneg %p115
      $region14: #{tpu_custom_call.1} parent=5 // pred_check_branch
        %118 = sbr.rel (%p116) target = $region16
      $region15: #{tpu_custom_call.1} parent=5 // pred_region
        // Predicated region
        $region17: #{tpu_custom_call.1} parent=15 // pred_check
          %p119 = pneg %p42
        $region18: #{tpu_custom_call.1} parent=15 // pred_check_branch
          %121 = sbr.rel (%p119) target = $region20
        $region19: #{tpu_custom_call.1} parent=15 // pred_region
          %s122 = sand.u32 %s32, 1
          %s123 = scalar_lea.sflag [#allocation5], %s122
          %s124 = sand.u32 %s32, 1
          %s125 = smul.addr %s124, 64
          %s126 = scalar_lea.vmem [#allocation4], %s125
          %s127 = smul.u32 4, %s22
          %s128 = ssub.s32 13, %s127
          %p129 = scmp.lt.s32.totalorder %s128, 4
          %s130 = scalar_select %p129, %s128, 4
          %s131 = smul.u32 128, %s130
          %s132 = smul.u32 %s131, 2
          %s134 = ssub.s32 1024, %s132
          %135 = vsyncadd %s123, %s134
          %p136 = scmp.ne.s32.totalorder 0, %s132
          %s137 = smul.addr %s127, 2
          %s138 = smul.addr %s137, 128
          %s139 = scalar_lea.hbm %s1, %s138
          %s140 = smul.u32 16, %s130
          %s141 = sshll.u32 %s126, 4
          %s142 = int_to_ptr.vmem [resolvable:$true] %s141
          %s143 = sshll.u32 %s140, 4
          %147 = dma.hbm_to_vmem [thread:$0]  (%p136), %s139, %s143, %s142, %s123, 256, 256, 16
        $region20: #{tpu_custom_call.1} parent=15 // pred_fallthru
          _
        // Predicated region
        $region21: #{tpu_custom_call.1} parent=15 // pred_check
          %p148 = pneg %p68
        $region22: #{tpu_custom_call.1} parent=15 // pred_check_branch
          %150 = sbr.rel (%p148) target = $region24
        $region23: #{tpu_custom_call.1} parent=15 // pred_region
          %s151 = sand.u32 %s58, 1
          %s152 = scalar_lea.sflag [#allocation8], %s151
          %s153 = sand.u32 %s58, 1
          %s154 = smul.addr %s153, 64
          %s155 = scalar_lea.vmem [#allocation7], %s154
          %s156 = smul.u32 4, %s22
          %s157 = ssub.s32 13, %s156
          %p158 = scmp.lt.s32.totalorder %s157, 4
          %s159 = scalar_select %p158, %s157, 4
          %s160 = smul.u32 128, %s159
          %s161 = smul.u32 %s160, 2
          %s163 = ssub.s32 1024, %s161
          %164 = vsyncadd %s152, %s163
          %p165 = scmp.ne.s32.totalorder 0, %s161
          %s166 = smul.addr %s156, 2
          %s167 = smul.addr %s166, 128
          %s168 = scalar_lea.hbm %s2, %s167
          %s169 = smul.u32 16, %s159
          %s170 = sshll.u32 %s155, 4
          %s171 = int_to_ptr.vmem [resolvable:$true] %s170
          %s172 = sshll.u32 %s169, 4
          %176 = dma.hbm_to_vmem [thread:$0]  (%p165), %s168, %s172, %s171, %s152, 256, 256, 16
        $region24: #{tpu_custom_call.1} parent=15 // pred_fallthru
          _
      $region16: #{tpu_custom_call.1} parent=5 // pred_fallthru
        _
      %p177 = scmp.le.s32.totalorder 1, %s22
      %p178 = scmp.lt.s32.totalorder %s22, 5
      %p179 = pnand %p177, %p178
      %p180 = pneg %p179
      // Predicated region
      $region25: #{tpu_custom_call.1} parent=5 // pred_check
        _
      $region26: #{tpu_custom_call.1} parent=5 // pred_check_branch
        %182 = sbr.rel (%p179) target = $region28
      $region27: #{tpu_custom_call.1} parent=5 // pred_region
        %s183 = ssub.s32 %s22, 1
        %s184 = sand.u32 %s35, 1
        %s185 = scalar_lea.sflag [#allocation5], %s184
        %s186 = sand.u32 %s35, 1
        %s187 = smul.addr %s186, 64
        %s188 = scalar_lea.vmem [#allocation4], %s187
        // Predicated region
        $region29: #{tpu_custom_call.1} parent=27 // pred_check
          %p189 = pneg %p48
        $region30: #{tpu_custom_call.1} parent=27 // pred_check_branch
          %191 = sbr.rel (%p189) target = $region32
        $region31: #{tpu_custom_call.1} parent=27 // pred_region
          %192 = dma.done %s185, 1024
        $region32: #{tpu_custom_call.1} parent=27 // pred_fallthru
          _
        %s193 = sand.u32 %s61, 1
        %s194 = scalar_lea.sflag [#allocation8], %s193
        %s195 = sand.u32 %s61, 1
        %s196 = smul.addr %s195, 64
        %s197 = scalar_lea.vmem [#allocation7], %s196
        // Predicated region
        $region33: #{tpu_custom_call.1} parent=27 // pred_check
          %p198 = pneg %p74
        $region34: #{tpu_custom_call.1} parent=27 // pred_check_branch
          %200 = sbr.rel (%p198) target = $region36
        $region35: #{tpu_custom_call.1} parent=27 // pred_region
          %201 = dma.done %s194, 1024
        $region36: #{tpu_custom_call.1} parent=27 // pred_fallthru
          _
        %s202 = sand.u32 %s35, 1
        %s203 = scalar_lea.sflag [#allocation5], %s202
        %s204 = sand.u32 %s35, 1
        %s205 = smul.addr %s204, 64
        %s206 = scalar_lea.vmem [#allocation4], %s205
        %p207 = pneg %p48
        %p208 = pneg %p45
        %s209 = sand.u32 %s61, 1
        %s210 = scalar_lea.sflag [#allocation8], %s209
        %s211 = sand.u32 %s61, 1
        %s212 = smul.addr %s211, 64
        %s213 = scalar_lea.vmem [#allocation7], %s212
        %p214 = pneg %p74
        %p215 = pneg %p71
        %p216 = pneg %p100
        %p217 = pneg %p97
        %s218 = sand.u32 %s87, 1
        %s219 = scalar_lea.sflag [#allocation6], %s218
        %s220 = sand.u32 %s87, 1
        %s221 = smul.addr %s220, 64
        %s222 = scalar_lea.vmem [#allocation9], %s221
        %s223 = smul.u32 4, %s27
        %s224 = ssub.s32 13, %s223
        %p225 = scmp.lt.s32.totalorder %s224, 4
        %s226 = scalar_select %p225, %s224, 4
        %s227 = smul.u32 128, %s226
        %s228 = smul.u32 %s227, 2
        %s229 = smul.u32 4, %s27
        %s230 = ssub.s32 13, %s229
        %p231 = scmp.lt.s32.totalorder %s230, 4
        %s232 = scalar_select %p231, %s230, 4
        %s233 = smul.u32 128, %s232
        %s234 = smul.u32 %s233, 2
        %s235 = smul.u32 4, %s27
        %s236 = ssub.s32 13, %s235
        %p237 = scmp.lt.s32.totalorder %s236, 4
        %s238 = scalar_select %p237, %s236, 4
        %s239 = smul.u32 128, %s238
        %s240 = smul.u32 %s239, 2
        %v241 = vld [vmem:[%s188] sm:$0xff]
        %v242 = vld [vmem:[%s188 + $0x8] sm:$0xff]
        %v243 = vld [vmem:[%s188 + $0x10] sm:$0xff]
        %v244 = vld [vmem:[%s188 + $0x18] sm:$0xff]
        %v245 = vld [vmem:[%s188 + $0x20] sm:$0xff]
        %v246 = vld [vmem:[%s188 + $0x28] sm:$0xff]
        %v247 = vld [vmem:[%s188 + $0x30] sm:$0xff]
        %v248 = vld [vmem:[%s188 + $0x38] sm:$0xff]
        %v249 = vld [vmem:[%s197] sm:$0xff]
        %v250 = vld [vmem:[%s197 + $0x8] sm:$0xff]
        %v251 = vld [vmem:[%s197 + $0x10] sm:$0xff]
        %v252 = vld [vmem:[%s197 + $0x18] sm:$0xff]
        %v253 = vld [vmem:[%s197 + $0x20] sm:$0xff]
        %v254 = vld [vmem:[%s197 + $0x28] sm:$0xff]
        %v255 = vld [vmem:[%s197 + $0x30] sm:$0xff]
        %v256 = vld [vmem:[%s197 + $0x38] sm:$0xff]
        %s257 = sld [smem:[#allocation3]]
        %s258 = sld [smem:[#allocation3 + $0x1]]
        %s259 = sld [smem:[#allocation3 + $0x2]]
        %s260 = sld [smem:[#allocation3 + $0x5]]
        %s261 = sld [smem:[#allocation3 + $0x6]]
        %s262 = sld [smem:[#allocation3 + $0x3]]
        %s263 = sld [smem:[#allocation3 + $0x4]]
        %v264 = vstv %s257
        %v265 = vsub.f32 %v241, %v264
        %v266 = vsub.f32 %v242, %v264
        %v267 = vsub.f32 %v243, %v264
        %v268 = vsub.f32 %v244, %v264
        %v269 = vsub.f32 %v245, %v264
        %v270 = vsub.f32 %v246, %v264
        %v271 = vsub.f32 %v247, %v264
        %v272 = vsub.f32 %v248, %v264
        %v273 = vstv %s258
        %v274 = vsub.f32 %v249, %v273
        %v275 = vsub.f32 %v250, %v273
        %v276 = vsub.f32 %v251, %v273
        %v277 = vsub.f32 %v252, %v273
        %v278 = vsub.f32 %v253, %v273
        %v279 = vsub.f32 %v254, %v273
        %v280 = vsub.f32 %v255, %v273
        %v281 = vsub.f32 %v256, %v273
        %v282 = vstv %s260
        %v283 = vmul.f32 %v282, %v265
        %v284 = vmul.f32 %v282, %v266
        %v285 = vmul.f32 %v282, %v267
        %v286 = vmul.f32 %v282, %v268
        %v287 = vmul.f32 %v282, %v269
        %v288 = vmul.f32 %v282, %v270
        %v289 = vmul.f32 %v282, %v271
        %v290 = vmul.f32 %v282, %v272
        %v291 = vstv %s261
        %v292 = vmul.f32 %v291, %v274
        %v293 = vmul.f32 %v291, %v275
        %v294 = vmul.f32 %v291, %v276
        %v295 = vmul.f32 %v291, %v277
        %v296 = vmul.f32 %v291, %v278
        %v297 = vmul.f32 %v291, %v279
        %v298 = vmul.f32 %v291, %v280
        %v299 = vmul.f32 %v291, %v281
        %v300 = vadd.f32 %v283, %v292
        %v301 = vadd.f32 %v284, %v293
        %v302 = vadd.f32 %v285, %v294
        %v303 = vadd.f32 %v286, %v295
        %v304 = vadd.f32 %v287, %v296
        %v305 = vadd.f32 %v288, %v297
        %v306 = vadd.f32 %v289, %v298
        %v307 = vadd.f32 %v290, %v299
        %v308 = vmul.f32 %v291, %v265
        %v309 = vmul.f32 %v291, %v266
        %v310 = vmul.f32 %v291, %v267
        %v311 = vmul.f32 %v291, %v268
        %v312 = vmul.f32 %v291, %v269
        %v313 = vmul.f32 %v291, %v270
        %v314 = vmul.f32 %v291, %v271
        %v315 = vmul.f32 %v291, %v272
        %v316 = vmul.f32 %v282, %v274
        %v317 = vmul.f32 %v282, %v275
        %v318 = vmul.f32 %v282, %v276
        %v319 = vmul.f32 %v282, %v277
        %v320 = vmul.f32 %v282, %v278
        %v321 = vmul.f32 %v282, %v279
        %v322 = vmul.f32 %v282, %v280
        %v323 = vmul.f32 %v282, %v281
        %v324 = vsub.f32 %v308, %v316
        %v325 = vsub.f32 %v309, %v317
        %v326 = vsub.f32 %v310, %v318
        %v327 = vsub.f32 %v311, %v319
        %v328 = vsub.f32 %v312, %v320
        %v329 = vsub.f32 %v313, %v321
        %v330 = vsub.f32 %v314, %v322
        %v331 = vsub.f32 %v315, %v323
        %v332 = vmul.f32 %v300, %v300
        %v333 = vmul.f32 %v301, %v301
        %v334 = vmul.f32 %v302, %v302
        %v335 = vmul.f32 %v303, %v303
        %v336 = vmul.f32 %v304, %v304
        %v337 = vmul.f32 %v305, %v305
        %v338 = vmul.f32 %v306, %v306
        %v339 = vmul.f32 %v307, %v307
        %v340 = vstv %s262
        %v341 = vmul.f32 %v332, %v340
        %v342 = vmul.f32 %v333, %v340
        %v343 = vmul.f32 %v334, %v340
        %v344 = vmul.f32 %v335, %v340
        %v345 = vmul.f32 %v336, %v340
        %v346 = vmul.f32 %v337, %v340
        %v347 = vmul.f32 %v338, %v340
        %v348 = vmul.f32 %v339, %v340
        %v349 = vmul.f32 %v324, %v324
        %v350 = vmul.f32 %v325, %v325
        %v351 = vmul.f32 %v326, %v326
        %v352 = vmul.f32 %v327, %v327
        %v353 = vmul.f32 %v328, %v328
        %v354 = vmul.f32 %v329, %v329
        %v355 = vmul.f32 %v330, %v330
        %v356 = vmul.f32 %v331, %v331
        %v357 = vstv %s263
        %v358 = vmul.f32 %v349, %v357
        %v359 = vmul.f32 %v350, %v357
        %v360 = vmul.f32 %v351, %v357
        %v361 = vmul.f32 %v352, %v357
        %v362 = vmul.f32 %v353, %v357
        %v363 = vmul.f32 %v354, %v357
        %v364 = vmul.f32 %v355, %v357
        %v365 = vmul.f32 %v356, %v357
        %v366 = vadd.f32 %v341, %v358
        %v367 = vadd.f32 %v342, %v359
        %v368 = vadd.f32 %v343, %v360
        %v369 = vadd.f32 %v344, %v361
        %v370 = vadd.f32 %v345, %v362
        %v371 = vadd.f32 %v346, %v363
        %v372 = vadd.f32 %v347, %v364
        %v373 = vadd.f32 %v348, %v365
        %v374 = vmul.f32 %v366, 1.442695
        %v375 = vpow.pop %v374
        %v376 = vmul.f32 %v367, 1.442695
        %v377 = vpow.pop %v376
        %v378 = vmul.f32 %v368, 1.442695
        %v379 = vpow.pop %v378
        %v380 = vmul.f32 %v369, 1.442695
        %v381 = vpow.pop %v380
        %v382 = vmul.f32 %v370, 1.442695
        %v383 = vpow.pop %v382
        %v384 = vmul.f32 %v371, 1.442695
        %v385 = vpow.pop %v384
        %v386 = vmul.f32 %v372, 1.442695
        %v387 = vpow.pop %v386
        %v388 = vmul.f32 %v373, 1.442695
        %v389 = vpow.pop %v388
        %v390 = vstv %s259
        %v391 = vmul.f32 %v390, %v375
        %v392 = vmul.f32 %v390, %v377
        %v393 = vmul.f32 %v390, %v379
        %v394 = vmul.f32 %v390, %v381
        %v395 = vmul.f32 %v390, %v383
        %v396 = vmul.f32 %v390, %v385
        %v397 = vmul.f32 %v390, %v387
        %v398 = vmul.f32 %v390, %v389
        %399 = vst [vmem:[%s222] sm:$0xff] %v391
        %400 = vst [vmem:[%s222 + $0x8] sm:$0xff] %v392
        %401 = vst [vmem:[%s222 + $0x10] sm:$0xff] %v393
        %402 = vst [vmem:[%s222 + $0x18] sm:$0xff] %v394
        %403 = vst [vmem:[%s222 + $0x20] sm:$0xff] %v395
        %404 = vst [vmem:[%s222 + $0x28] sm:$0xff] %v396
        %405 = vst [vmem:[%s222 + $0x30] sm:$0xff] %v397
        %406 = vst [vmem:[%s222 + $0x38] sm:$0xff] %v398
        %s407 = sand.u32 %s87, 1
        %s408 = scalar_lea.sflag [#allocation6], %s407
        %s409 = sand.u32 %s87, 1
        %s410 = smul.addr %s409, 64
        %s411 = scalar_lea.vmem [#allocation9], %s410
        // Predicated region
        $region37: #{tpu_custom_call.1} parent=27 // pred_check
          %p412 = pneg %p97
        $region38: #{tpu_custom_call.1} parent=27 // pred_check_branch
          %414 = sbr.rel (%p412) target = $region40
        $region39: #{tpu_custom_call.1} parent=27 // pred_region
          %s415 = smul.u32 4, %s27
          %s416 = ssub.s32 13, %s415
          %p417 = scmp.lt.s32.totalorder %s416, 4
          %s418 = scalar_select %p417, %s416, 4
          %s419 = smul.u32 128, %s418
          %s420 = smul.u32 %s419, 2
          %s422 = ssub.s32 1024, %s420
          %423 = vsyncadd %s408, %s422
          %p424 = scmp.ne.s32.totalorder 0, %s420
          %s425 = smul.addr %s415, 2
          %s426 = smul.addr %s425, 128
          %s427 = scalar_lea.hbm %s3, %s426
          %s428 = smul.u32 16, %s418
          %s429 = sshll.u32 %s411, 4
          %s430 = int_to_ptr.vmem [resolvable:$true] %s429
          %s431 = sshll.u32 %s428, 4
          %435 = dma.vmem_to_hbm [thread:$0]  (%p424), %s430, %s431, %s427, %s408, 256, 256, 16
        $region40: #{tpu_custom_call.1} parent=27 // pred_fallthru
          _
      $region28: #{tpu_custom_call.1} parent=5 // pred_fallthru
        _
      %p436 = scmp.le.s32.totalorder 2, %s22
      // Predicated region
      $region41: #{tpu_custom_call.1} parent=5 // pred_check
        %p437 = pneg %p436
      $region42: #{tpu_custom_call.1} parent=5 // pred_check_branch
        %439 = sbr.rel (%p437) target = $region44
      $region43: #{tpu_custom_call.1} parent=5 // pred_region
        %s440 = ssub.s32 %s22, 2
        // Predicated region
        $region45: #{tpu_custom_call.1} parent=43 // pred_check
          %p441 = pneg %p103
        $region46: #{tpu_custom_call.1} parent=43 // pred_check_branch
          %443 = sbr.rel (%p441) target = $region48
        $region47: #{tpu_custom_call.1} parent=43 // pred_region
          %s444 = sand.u32 %s88, 1
          %s445 = scalar_lea.sflag [#allocation6], %s444
          %s446 = sand.u32 %s88, 1
          %s447 = smul.addr %s446, 64
          %s448 = scalar_lea.vmem [#allocation9], %s447
          %449 = dma.done %s445, 1024
        $region48: #{tpu_custom_call.1} parent=43 // pred_fallthru
          _
      $region44: #{tpu_custom_call.1} parent=5 // pred_fallthru
        _
    $region6: #{tpu_custom_call.1} parent=1 // loop_footer
      %s26 = sadd.s32 1, %s22
    $region7: #{tpu_custom_call.1} parent=1 // loop_footer_branch
      %21 = sbr.rel target = $region3
    $region8: #{tpu_custom_call.1} parent=1 // loop_exit
      _
    %450 = vsyncpa [#allocation5], 1
    %s451 = scalar_lea.sflag [#allocation5], 1
    %452 = vsyncpa %s451, 1
    %453 = vsyncpa [#allocation8], 1
    %s454 = scalar_lea.sflag [#allocation8], 1
    %455 = vsyncpa %s454, 1
    %456 = vsyncpa [#allocation6], 1
    %s457 = scalar_lea.sflag [#allocation6], 1
    %458 = vsyncpa %s457, 1

</llo_original>
